<compile_context>
chip_gen: v5e
topology: v5e:2x2
jax: 0.10.0
libtpu: 0.0.40
codegen_flags: <defaults>
</compile_context>

<pallas_src>
import jax
import jax.numpy as jnp
from jax.experimental import pallas as pl
from jax.experimental.pallas import tpu as pltpu


def _round_up(x, m):
    return ((x + m - 1) // m) * m


def _seg_loss_kernel(logits_ref, labels_ref, out_ref):
    # logits_ref: (1, C, 1, S, 128)  native dtype, one batch element / pixel tile
    # labels_ref: (1, 1, S, 128)     int32 (padding pixels are -1)
    # out_ref:    (1, 1, 8, 128)     f32 per-tile partial sums (unique per grid step)
    C = logits_ref.shape[1]
    S = logits_ref.shape[3]

    labels = labels_ref[0, 0]                                    # (S, 128) int32

    def ch(c):
        # one channel slice, cast to f32 only after the DMA (no wrapper up-cast)
        return logits_ref[0, c, 0].astype(jnp.float32)           # (S, 128)

    # channel-wise max: elementwise VPU ops across C slices (C is a leading axis)
    m = ch(0)
    for c in range(1, C):
        m = jnp.maximum(m, ch(c))

    # exp-sum over channels + masked select of the target-class logit
    x0 = ch(0)
    acc = jnp.exp(x0 - m)
    sel = jnp.where(labels == 0, x0, 0.0)
    for c in range(1, C):
        xc = ch(c)
        acc = acc + jnp.exp(xc - m)
        sel = sel + jnp.where(labels == c, xc, 0.0)

    lse = m + jnp.log(acc)                                       # (S, 128)

    # negative labels (= padding) contribute nothing.
    # TODO(synk): full PyTorch ignore_index=-100 support would also need a
    #             valid-pixel count output to adjust the mean denominator.
    nll = jnp.where(labels >= 0, lse - sel, 0.0)                 # (S, 128)

    # Partial tree-reduction down to a dense (8, 128) slab (pure VPU adds);
    # the final scalar sum happens in the wrapper.
    out_ref[0, 0] = nll.reshape(S // 8, 8, 128).sum(axis=0)


def segmentation_loss(segment, groundtruth, *, tile_pixels=8192):
    """segment: (N, C, H, W) float logits; groundtruth: (N, H, W) int class ids."""
    N, C, H, W = segment.shape
    L = H * W

    # Pixel-tile size: multiple of 8*128 = 1024 pixels, clamped for small images.
    # Per-tile VMEM ~= 2 bufs * (C*TL*itemsize + TL*4) — a few hundred KiB for
    # realistic C, comfortably inside v5e/v6e/v7x scoped-VMEM defaults.
    TL = min(_round_up(tile_pixels, 1024), _round_up(L, 1024))
    L_pad = _round_up(L, TL)
    T = L_pad // TL           # number of pixel tiles
    S = TL // 128             # sublane extent of one tile

    logits = segment.reshape(N, C, L)                            # native dtype, no up-cast
    labels = groundtruth.reshape(N, L).astype(jnp.int32)
    if L_pad != L:
        logits = jnp.pad(logits, ((0, 0), (0, 0), (0, L_pad - L)))
        labels = jnp.pad(labels, ((0, 0), (0, L_pad - L)), constant_values=-1)

    # channels-leading, pixel-dense layout: pixels on (sublane, lane)
    logits = logits.reshape(N, C, T, S, 128)
    labels = labels.reshape(N, T, S, 128)
    # TODO(synk): labels could be stored as int16/uint8 to shrink HBM traffic at
    #             small C; kept int32 here to stay on the known-safe tiling path.

    itemsize = jnp.dtype(logits.dtype).itemsize
    bytes_accessed = N * C * L_pad * itemsize + N * L_pad * 4 + N * T * 8 * 128 * 4
    cost = pl.CostEstimate(
        flops=5 * N * C * L_pad,
        transcendentals=N * (C + 1) * L_pad,
        bytes_accessed=bytes_accessed,
    )

    partials = pl.pallas_call(
        _seg_loss_kernel,
        out_shape=jax.ShapeDtypeStruct((N, T, 8, 128), jnp.float32),
        grid_spec=pltpu.PrefetchScalarGridSpec(
            num_scalar_prefetch=0,
            grid=(N, T),
            in_specs=[
                pl.BlockSpec((1, C, 1, S, 128), lambda n, t: (n, 0, t, 0, 0)),
                pl.BlockSpec((1, 1, S, 128), lambda n, t: (n, t, 0, 0)),
            ],
            out_specs=pl.BlockSpec((1, 1, 8, 128), lambda n, t: (n, t, 0, 0)),
        ),
        compiler_params=pltpu.CompilerParams(
            # every grid step owns its output block -> both axes shardable
            # across the two v7x TensorCores
            dimension_semantics=("parallel", "parallel"),
        ),
        cost_estimate=cost,
    )(logits, labels)

    # Final mean over the true pixel count, in f32, in the wrapper.
    return jnp.sum(partials) / jnp.float32(N * L)


def _reference_loss(segment, groundtruth):
    # pure-JAX reference for sanity checking
    N, C, H, W = segment.shape
    logits = segment.reshape(N, C, H * W).astype(jnp.float32)
    labels = groundtruth.reshape(N, H * W).astype(jnp.int32)
    logp = jax.nn.log_softmax(logits, axis=1)                    # (N, C, L)
    picked = jnp.take_along_axis(logp, labels[:, None, :], axis=1)[:, 0, :]
    return -jnp.mean(picked)


if __name__ == "__main__":
    key = jax.random.PRNGKey(0)
    k1, k2 = jax.random.split(key)

    N, C, H, W = 2, 4, 16, 16
    segment = jax.random.normal(k1, (N, C, H, W), dtype=jnp.float32)
    groundtruth = jax.random.randint(k2, (N, H, W), 0, C, dtype=jnp.int32)

    loss = jax.block_until_ready(segmentation_loss(segment, groundtruth))
    ref = jax.block_until_ready(_reference_loss(segment, groundtruth))

    assert jnp.isfinite(loss)
    assert jnp.allclose(loss, ref, rtol=1e-5, atol=1e-5), (loss, ref)
    print("KERNEL_OK")
</pallas_src>

<mosaic_0001>
module attributes {stable_mosaic.version = 11 : i64} {
  func.func @_seg_loss_kernel(%arg0: i32, %arg1: i32, %arg2: memref<1x4x1x8x128xf32, #tpu.memory_space<vmem>>, %arg3: memref<1x1x8x128xi32, #tpu.memory_space<vmem>>, %arg4: memref<1x1x8x128xf32, #tpu.memory_space<vmem>>) attributes {dimension_semantics = [#tpu.dimension_semantics<parallel>, #tpu.dimension_semantics<parallel>], iteration_bounds = array<i64: 2, 1>, scalar_prefetch = 0 : i64, scratch_operands = 0 : i64, tpu.core_type = #tpu.core_type<tc>, window_params = [{transform_indices = @transform_0, window_bounds = array<i64: 1, 4, 1, 8, 128>}, {transform_indices = @transform_1, window_bounds = array<i64: 1, 1, 8, 128>}, {transform_indices = @transform_2, window_bounds = array<i64: 1, 1, 8, 128>}]} {
    %c0 = arith.constant 0 : index
    %c0_0 = arith.constant 0 : index
    %c0_1 = arith.constant 0 : index
    %c0_2 = arith.constant 0 : index
    %0 = vector.load %arg3[%c0, %c0_0, %c0_1, %c0_2] : memref<1x1x8x128xi32, #tpu.memory_space<vmem>>, vector<1x1x8x128xi32>
    %1 = vector.shape_cast %0 : vector<1x1x8x128xi32> to vector<8x128xi32>
    %c0_3 = arith.constant 0 : index
    %c0_4 = arith.constant 0 : index
    %c0_5 = arith.constant 0 : index
    %c0_6 = arith.constant 0 : index
    %c0_7 = arith.constant 0 : index
    %2 = vector.load %arg2[%c0_3, %c0_4, %c0_5, %c0_6, %c0_7] : memref<1x4x1x8x128xf32, #tpu.memory_space<vmem>>, vector<1x1x1x8x128xf32>
    %3 = vector.shape_cast %2 : vector<1x1x1x8x128xf32> to vector<8x128xf32>
    %c0_8 = arith.constant 0 : index
    %c1 = arith.constant 1 : index
    %c0_9 = arith.constant 0 : index
    %c0_10 = arith.constant 0 : index
    %c0_11 = arith.constant 0 : index
    %4 = vector.load %arg2[%c0_8, %c1, %c0_9, %c0_10, %c0_11] : memref<1x4x1x8x128xf32, #tpu.memory_space<vmem>>, vector<1x1x1x8x128xf32>
    %5 = vector.shape_cast %4 : vector<1x1x1x8x128xf32> to vector<8x128xf32>
    %6 = arith.maximumf %3, %5 : vector<8x128xf32>
    %c0_12 = arith.constant 0 : index
    %c2 = arith.constant 2 : index
    %c0_13 = arith.constant 0 : index
    %c0_14 = arith.constant 0 : index
    %c0_15 = arith.constant 0 : index
    %7 = vector.load %arg2[%c0_12, %c2, %c0_13, %c0_14, %c0_15] : memref<1x4x1x8x128xf32, #tpu.memory_space<vmem>>, vector<1x1x1x8x128xf32>
    %8 = vector.shape_cast %7 : vector<1x1x1x8x128xf32> to vector<8x128xf32>
    %9 = arith.maximumf %6, %8 : vector<8x128xf32>
    %c0_16 = arith.constant 0 : index
    %c3 = arith.constant 3 : index
    %c0_17 = arith.constant 0 : index
    %c0_18 = arith.constant 0 : index
    %c0_19 = arith.constant 0 : index
    %10 = vector.load %arg2[%c0_16, %c3, %c0_17, %c0_18, %c0_19] : memref<1x4x1x8x128xf32, #tpu.memory_space<vmem>>, vector<1x1x1x8x128xf32>
    %11 = vector.shape_cast %10 : vector<1x1x1x8x128xf32> to vector<8x128xf32>
    %12 = arith.maximumf %9, %11 : vector<8x128xf32>
    %c0_20 = arith.constant 0 : index
    %c0_21 = arith.constant 0 : index
    %c0_22 = arith.constant 0 : index
    %c0_23 = arith.constant 0 : index
    %c0_24 = arith.constant 0 : index
    %13 = vector.load %arg2[%c0_20, %c0_21, %c0_22, %c0_23, %c0_24] : memref<1x4x1x8x128xf32, #tpu.memory_space<vmem>>, vector<1x1x1x8x128xf32>
    %14 = vector.shape_cast %13 : vector<1x1x1x8x128xf32> to vector<8x128xf32>
    %15 = arith.subf %14, %12 : vector<8x128xf32>
    %16 = math.exp %15 : vector<8x128xf32>
    %c0_i32 = arith.constant 0 : i32
    %17 = vector.broadcast %c0_i32 : i32 to vector<8x128xi32>
    %18 = arith.cmpi eq, %1, %17 : vector<8x128xi32>
    %cst = arith.constant 0.000000e+00 : f32
    %19 = vector.broadcast %cst : f32 to vector<8x128xf32>
    %20 = arith.select %18, %14, %19 : vector<8x128xi1>, vector<8x128xf32>
    %c0_25 = arith.constant 0 : index
    %c1_26 = arith.constant 1 : index
    %c0_27 = arith.constant 0 : index
    %c0_28 = arith.constant 0 : index
    %c0_29 = arith.constant 0 : index
    %21 = vector.load %arg2[%c0_25, %c1_26, %c0_27, %c0_28, %c0_29] : memref<1x4x1x8x128xf32, #tpu.memory_space<vmem>>, vector<1x1x1x8x128xf32>
    %22 = vector.shape_cast %21 : vector<1x1x1x8x128xf32> to vector<8x128xf32>
    %23 = arith.subf %22, %12 : vector<8x128xf32>
    %24 = math.exp %23 : vector<8x128xf32>
    %25 = arith.addf %16, %24 : vector<8x128xf32>
    %c1_i32 = arith.constant 1 : i32
    %26 = vector.broadcast %c1_i32 : i32 to vector<8x128xi32>
    %27 = arith.cmpi eq, %1, %26 : vector<8x128xi32>
    %cst_30 = arith.constant 0.000000e+00 : f32
    %28 = vector.broadcast %cst_30 : f32 to vector<8x128xf32>
    %29 = arith.select %27, %22, %28 : vector<8x128xi1>, vector<8x128xf32>
    %30 = arith.addf %20, %29 : vector<8x128xf32>
    %c0_31 = arith.constant 0 : index
    %c2_32 = arith.constant 2 : index
    %c0_33 = arith.constant 0 : index
    %c0_34 = arith.constant 0 : index
    %c0_35 = arith.constant 0 : index
    %31 = vector.load %arg2[%c0_31, %c2_32, %c0_33, %c0_34, %c0_35] : memref<1x4x1x8x128xf32, #tpu.memory_space<vmem>>, vector<1x1x1x8x128xf32>
    %32 = vector.shape_cast %31 : vector<1x1x1x8x128xf32> to vector<8x128xf32>
    %33 = arith.subf %32, %12 : vector<8x128xf32>
    %34 = math.exp %33 : vector<8x128xf32>
    %35 = arith.addf %25, %34 : vector<8x128xf32>
    %c2_i32 = arith.constant 2 : i32
    %36 = vector.broadcast %c2_i32 : i32 to vector<8x128xi32>
    %37 = arith.cmpi eq, %1, %36 : vector<8x128xi32>
    %cst_36 = arith.constant 0.000000e+00 : f32
    %38 = vector.broadcast %cst_36 : f32 to vector<8x128xf32>
    %39 = arith.select %37, %32, %38 : vector<8x128xi1>, vector<8x128xf32>
    %40 = arith.addf %30, %39 : vector<8x128xf32>
    %c0_37 = arith.constant 0 : index
    %c3_38 = arith.constant 3 : index
    %c0_39 = arith.constant 0 : index
    %c0_40 = arith.constant 0 : index
    %c0_41 = arith.constant 0 : index
    %41 = vector.load %arg2[%c0_37, %c3_38, %c0_39, %c0_40, %c0_41] : memref<1x4x1x8x128xf32, #tpu.memory_space<vmem>>, vector<1x1x1x8x128xf32>
    %42 = vector.shape_cast %41 : vector<1x1x1x8x128xf32> to vector<8x128xf32>
    %43 = arith.subf %42, %12 : vector<8x128xf32>
    %44 = math.exp %43 : vector<8x128xf32>
    %45 = arith.addf %35, %44 : vector<8x128xf32>
    %c3_i32 = arith.constant 3 : i32
    %46 = vector.broadcast %c3_i32 : i32 to vector<8x128xi32>
    %47 = arith.cmpi eq, %1, %46 : vector<8x128xi32>
    %cst_42 = arith.constant 0.000000e+00 : f32
    %48 = vector.broadcast %cst_42 : f32 to vector<8x128xf32>
    %49 = arith.select %47, %42, %48 : vector<8x128xi1>, vector<8x128xf32>
    %50 = arith.addf %40, %49 : vector<8x128xf32>
    %51 = math.log %45 : vector<8x128xf32>
    %52 = arith.addf %12, %51 : vector<8x128xf32>
    %c0_i32_43 = arith.constant 0 : i32
    %53 = vector.broadcast %c0_i32_43 : i32 to vector<8x128xi32>
    %54 = arith.cmpi sge, %1, %53 : vector<8x128xi32>
    %55 = arith.subf %52, %50 : vector<8x128xf32>
    %cst_44 = arith.constant 0.000000e+00 : f32
    %56 = vector.broadcast %cst_44 : f32 to vector<8x128xf32>
    %57 = arith.select %54, %55, %56 : vector<8x128xi1>, vector<8x128xf32>
    %58 = vector.shape_cast %57 : vector<8x128xf32> to vector<1x8x128xf32>
    %cst_45 = arith.constant dense<0.000000e+00> : vector<8x128xf32>
    %59 = vector.multi_reduction <add>, %58, %cst_45 [0] : vector<1x8x128xf32> to vector<8x128xf32>
    %c0_46 = arith.constant 0 : index
    %c0_47 = arith.constant 0 : index
    %c0_48 = arith.constant 0 : index
    %c0_49 = arith.constant 0 : index
    %60 = vector.load %arg4[%c0_46, %c0_47, %c0_48, %c0_49] : memref<1x1x8x128xf32, #tpu.memory_space<vmem>>, vector<1x1x8x128xf32>
    %61 = vector.shape_cast %60 : vector<1x1x8x128xf32> to vector<8x128xf32>
    %62 = vector.shape_cast %59 : vector<8x128xf32> to vector<1x1x8x128xf32>
    tpu.vector_store %arg4[%c0_46, %c0_47, %c0_48, %c0_49], %62 {strides = array<i32>} : memref<1x1x8x128xf32, #tpu.memory_space<vmem>>, vector<1x1x8x128xf32>,
    return
  }
  func.func @transform_0(%arg0: i32, %arg1: i32) -> (i32, i32, i32, i32, i32) {
    %c0_i32 = arith.constant 0 : i32
    %c0_i32_0 = arith.constant 0 : i32
    %c0_i32_1 = arith.constant 0 : i32
    %c0_i32_2 = arith.constant 0 : i32
    return %arg0, %c0_i32, %arg1, %c0_i32_0, %c0_i32_1 : i32, i32, i32, i32, i32
  }
  func.func @transform_1(%arg0: i32, %arg1: i32) -> (i32, i32, i32, i32) {
    %c0_i32 = arith.constant 0 : i32
    %c0_i32_0 = arith.constant 0 : i32
    %c0_i32_1 = arith.constant 0 : i32
    return %arg0, %arg1, %c0_i32, %c0_i32_0 : i32, i32, i32, i32
  }
  func.func @transform_2(%arg0: i32, %arg1: i32) -> (i32, i32, i32, i32) {
    %c0_i32 = arith.constant 0 : i32
    %c0_i32_0 = arith.constant 0 : i32
    %c0_i32_1 = arith.constant 0 : i32
    return %arg0, %arg1, %c0_i32, %c0_i32_0 : i32, i32, i32, i32
  }
}

</mosaic_0001>

<llo_original>
// kernel: tpu_custom_call.1
$region0: #{tpu_custom_call.1}
  #allocation0 [shape = 'u32[]', space=smem, size = 0x4, offset = 0x4, fixed_abs, tag = 'smem constant byte address 0x4 - core index']
  #allocation1 [shape = 'u32[72,128]{1,0:T(1,128)}', space=vmem, size = 0x9000, scoped, tag = 'internal scratch']
  %s0 = inlined_call_operand.hbm [shape: f32[2,4,1,8,128], index: 0, kind: input, shape index: {}]
  %s1 = inlined_call_operand.hbm [shape: s32[2,1,8,128], index: 1, kind: input, shape index: {}]
  %s2 = inlined_call_operand.hbm [shape: f32[2,1,8,128], index: 2, kind: output, shape index: {}]
  %s3 = sld [smem:[#allocation0]]
  $region49: #{tpu_custom_call.1} parent=0
    _
  %s5 = ssub.s32 1, %s3
  %s6 = scalar_select 0, %s5, %s3
  $region1: #{tpu_custom_call.1} parent=0
    #allocation2 [shape = 'u8[32768]{0}', space=vmem, size = 0x8000, scoped, tag = 'input window, operand 0']
    #allocation3 [shape = 's32[2]{0}', space=sflag, size = 0x8, scoped, tag = 'scoped memory for tpu_custom_call.1']
    #allocation4 [shape = 's32[2]{0}', space=sflag, size = 0x8, scoped, tag = 'scoped memory for tpu_custom_call.1']
    #allocation5 [shape = 'u8[8192]{0}', space=vmem, size = 0x2000, scoped, tag = 'input window, operand 1']
    #allocation6 [shape = 's32[2]{0}', space=sflag, size = 0x8, scoped, tag = 'scoped memory for tpu_custom_call.1']
    #allocation7 [shape = 'u8[8192]{0}', space=vmem, size = 0x2000, scoped, tag = 'output window, operand 0']
    %7 = vsyncpa [#allocation3], 0
    %s8 = scalar_lea.sflag [#allocation3], 1
    %9 = vsyncpa %s8, 0
    %10 = vsyncpa [#allocation6], 0
    %s11 = scalar_lea.sflag [#allocation6], 1
    %12 = vsyncpa %s11, 0
    %13 = vsyncpa [#allocation4], 0
    %s14 = scalar_lea.sflag [#allocation4], 1
    %15 = vsyncpa %s14, 0
    loop: start=0, step=1, limit=4
    $region2: #{tpu_custom_call.1} parent=1 // loop_pre_header
      _
    $region3: #{tpu_custom_call.1} parent=1 // loop_header
      %s17 = sphi 0, %s21
      %p18 = scmp.ge.s32.totalorder %s17, 4
      %s24 = sphi 0, %s36
      %s25 = sphi 0, %s32
      %s26 = sphi 0, %s24
      %s27 = sphi 0, %s25
      %s28 = sphi 0, %s26
      %s29 = sphi 0, %s27
      %s41 = sphi 0, %s43
      %s44 = sphi 0, %s41
      %s45 = sphi 0, %s44
      %s61 = sphi 0, %s45
      %s69 = sphi 0, %s71
      %s72 = sphi 0, %s69
      %s73 = sphi 0, %s72
      %s89 = sphi 0, %s73
      %s97 = sphi 0, %s99
      %s100 = sphi 0, %s97
      %s101 = sphi 0, %s100
      %s117 = sphi 0, %s101
    $region4: #{tpu_custom_call.1} parent=1 // loop_header_branch
      %20 = sbr.rel (%p18) target = $region8
    $region5: #{tpu_custom_call.1} parent=1 // loop_body
      %s22 = ssub.s32 %s17, 1
      %s23 = ssub.s32 %s17, 2
      %s30 = sadd.s32 1, %s25
      %p31 = scmp.ge.s32.totalorder %s30, 1
      %s32 = scalar_select %p31, 0, %s30
      %s33 = sadd.s32 1, %s24
      %s34 = scalar_select %p31, %s33, %s24
      %p35 = scmp.ge.s32.totalorder %s34, 2
      %s36 = scalar_select %p35, 0, %s34
      %s37 = ssub.s32 %s24, %s36
      %s38 = ssub.s32 %s25, %s32
      %s39 = sor.u32 %s37, %s38
      %p40 = scmp.eq.s32.totalorder %s39, 0
      %s42 = sadd.s32 %s41, 1
      %s43 = scalar_select %p40, %s41, %s42
      %p46 = pneg %p40
      %p47 = scmp.eq.s32.totalorder %s17, 1
      %p48 = por %p46, %p47
      %p49 = scmp.ne.s32.totalorder %s41, %s44
      %p50 = scmp.eq.s32.totalorder %s17, 0
      %p51 = por %p49, %p50
      %p52 = scmp.ne.s32.totalorder %s41, %s44
      %p53 = scmp.eq.s32.totalorder %s22, 1
      %p54 = por %p52, %p53
      %p55 = scmp.ne.s32.totalorder %s44, %s45
      %p56 = scmp.eq.s32.totalorder %s22, 0
      %p57 = por %p55, %p56
      %p58 = scmp.ne.s32.totalorder %s44, %s45
      %p59 = scmp.eq.s32.totalorder %s23, 1
      %p60 = por %p58, %p59
      %p62 = scmp.ne.s32.totalorder %s45, %s61
      %p63 = scmp.eq.s32.totalorder %s23, 0
      %p64 = por %p62, %p63
      %s65 = ssub.s32 %s24, %s36
      %s66 = ssub.s32 %s25, %s32
      %s67 = sor.u32 %s65, %s66
      %p68 = scmp.eq.s32.totalorder %s67, 0
      %s70 = sadd.s32 %s69, 1
      %s71 = scalar_select %p68, %s69, %s70
      %p74 = pneg %p68
      %p75 = scmp.eq.s32.totalorder %s17, 1
      %p76 = por %p74, %p75
      %p77 = scmp.ne.s32.totalorder %s69, %s72
      %p78 = scmp.eq.s32.totalorder %s17, 0
      %p79 = por %p77, %p78
      %p80 = scmp.ne.s32.totalorder %s69, %s72
      %p81 = scmp.eq.s32.totalorder %s22, 1
      %p82 = por %p80, %p81
      %p83 = scmp.ne.s32.totalorder %s72, %s73
      %p84 = scmp.eq.s32.totalorder %s22, 0
      %p85 = por %p83, %p84
      %p86 = scmp.ne.s32.totalorder %s72, %s73
      %p87 = scmp.eq.s32.totalorder %s23, 1
      %p88 = por %p86, %p87
      %p90 = scmp.ne.s32.totalorder %s73, %s89
      %p91 = scmp.eq.s32.totalorder %s23, 0
      %p92 = por %p90, %p91
      %s93 = ssub.s32 %s24, %s36
      %s94 = ssub.s32 %s25, %s32
      %s95 = sor.u32 %s93, %s94
      %p96 = scmp.eq.s32.totalorder %s95, 0
      %s98 = sadd.s32 %s97, 1
      %s99 = scalar_select %p96, %s97, %s98
      %p102 = pneg %p96
      %p103 = scmp.eq.s32.totalorder %s17, 1
      %p104 = por %p102, %p103
      %p105 = scmp.ne.s32.totalorder %s97, %s100
      %p106 = scmp.eq.s32.totalorder %s17, 0
      %p107 = por %p105, %p106
      %p108 = scmp.ne.s32.totalorder %s97, %s100
      %p109 = scmp.eq.s32.totalorder %s22, 1
      %p110 = por %p108, %p109
      %p111 = scmp.ne.s32.totalorder %s100, %s101
      %p112 = scmp.eq.s32.totalorder %s22, 0
      %p113 = por %p111, %p112
      %p114 = scmp.ne.s32.totalorder %s100, %s101
      %p115 = scmp.eq.s32.totalorder %s23, 1
      %p116 = por %p114, %p115
      %p118 = scmp.ne.s32.totalorder %s101, %s117
      %p119 = scmp.eq.s32.totalorder %s23, 0
      %p120 = por %p118, %p119
      %p121 = scmp.le.s32.totalorder 1, %s17
      %p122 = scmp.lt.s32.totalorder %s17, 3
      %p123 = pnand %p121, %p122
      %p124 = pneg %p123
      // Predicated region
      $region9: #{tpu_custom_call.1} parent=5 // pred_check
        _
      $region10: #{tpu_custom_call.1} parent=5 // pred_check_branch
        %126 = sbr.rel (%p123) target = $region12
      $region11: #{tpu_custom_call.1} parent=5 // pred_region
        %s127 = ssub.s32 %s17, 1
      $region12: #{tpu_custom_call.1} parent=5 // pred_fallthru
        _
      %p128 = scmp.lt.s32.totalorder %s17, 2
      // Predicated region
      $region13: #{tpu_custom_call.1} parent=5 // pred_check
        %p129 = pneg %p128
      $region14: #{tpu_custom_call.1} parent=5 // pred_check_branch
        %131 = sbr.rel (%p129) target = $region16
      $region15: #{tpu_custom_call.1} parent=5 // pred_region
        // Predicated region
        $region17: #{tpu_custom_call.1} parent=15 // pred_check
          %p132 = pneg %p51
        $region18: #{tpu_custom_call.1} parent=15 // pred_check_branch
          %134 = sbr.rel (%p132) target = $region20
        $region19: #{tpu_custom_call.1} parent=15 // pred_region
          %s135 = sand.u32 %s41, 1
          %s136 = scalar_lea.sflag [#allocation3], %s135
          %s137 = sand.u32 %s41, 1
          %s138 = smul.addr %s137, 32
          %s139 = scalar_lea.vmem [#allocation2], %s138
          %141 = vsyncadd %s136, 0
          %s142 = smul.addr %s24, 4
          %s143 = sadd.s32 %s25, %s142
          %s144 = smul.addr %s143, 8
          %s145 = scalar_lea.hbm %s0, %s144
          %s146 = sshll.u32 %s145, 4
          %s147 = int_to_ptr.hbm [resolvable:$true] %s146
          %s148 = sshll.u32 %s139, 4
          %s149 = int_to_ptr.vmem [resolvable:$true] %s148
          %154 = dma.hbm_to_vmem [thread:$0]  %s147, 512, %s149, %s136, 128, 128, 8
        $region20: #{tpu_custom_call.1} parent=15 // pred_fallthru
          _
        // Predicated region
        $region21: #{tpu_custom_call.1} parent=15 // pred_check
          %p155 = pneg %p79
        $region22: #{tpu_custom_call.1} parent=15 // pred_check_branch
          %157 = sbr.rel (%p155) target = $region24
        $region23: #{tpu_custom_call.1} parent=15 // pred_region
          %s158 = sand.u32 %s69, 1
          %s159 = scalar_lea.sflag [#allocation6], %s158
          %s160 = sand.u32 %s69, 1
          %s161 = smul.addr %s160, 8
          %s162 = scalar_lea.vmem [#allocation5], %s161
          %164 = vsyncadd %s159, 0
          %s165 = sadd.s32 %s25, %s24
          %s166 = smul.addr %s165, 8
          %s167 = scalar_lea.hbm %s1, %s166
          %s169 = sshll.u32 %s167, 4
          %s170 = int_to_ptr.hbm [resolvable:$true] %s169
          %s171 = sshll.u32 %s162, 4
          %s172 = int_to_ptr.vmem [resolvable:$true] %s171
          %174 = dma.hbm_to_vmem [thread:$0]  %s170, 128, %s172, %s159
        $region24: #{tpu_custom_call.1} parent=15 // pred_fallthru
          _
      $region16: #{tpu_custom_call.1} parent=5 // pred_fallthru
        _
      %p175 = scmp.le.s32.totalorder 1, %s17
      %p176 = scmp.lt.s32.totalorder %s17, 3
      %p177 = pnand %p175, %p176
      %p178 = pneg %p177
      // Predicated region
      $region25: #{tpu_custom_call.1} parent=5 // pred_check
        _
      $region26: #{tpu_custom_call.1} parent=5 // pred_check_branch
        %180 = sbr.rel (%p177) target = $region28
      $region27: #{tpu_custom_call.1} parent=5 // pred_region
        %s181 = ssub.s32 %s17, 1
        %s182 = sand.u32 %s44, 1
        %s183 = scalar_lea.sflag [#allocation3], %s182
        %s184 = sand.u32 %s44, 1
        %s185 = smul.addr %s184, 32
        %s186 = scalar_lea.vmem [#allocation2], %s185
        // Predicated region
        $region29: #{tpu_custom_call.1} parent=27 // pred_check
          %p187 = pneg %p57
        $region30: #{tpu_custom_call.1} parent=27 // pred_check_branch
          %189 = sbr.rel (%p187) target = $region32
        $region31: #{tpu_custom_call.1} parent=27 // pred_region
          %191 = dma.done %s183, 512
        $region32: #{tpu_custom_call.1} parent=27 // pred_fallthru
          _
        %s192 = sand.u32 %s72, 1
        %s193 = scalar_lea.sflag [#allocation6], %s192
        %s194 = sand.u32 %s72, 1
        %s195 = smul.addr %s194, 8
        %s196 = scalar_lea.vmem [#allocation5], %s195
        // Predicated region
        $region33: #{tpu_custom_call.1} parent=27 // pred_check
          %p197 = pneg %p85
        $region34: #{tpu_custom_call.1} parent=27 // pred_check_branch
          %199 = sbr.rel (%p197) target = $region36
        $region35: #{tpu_custom_call.1} parent=27 // pred_region
          %201 = dma.done %s193, 128
        $region36: #{tpu_custom_call.1} parent=27 // pred_fallthru
          _
        %s202 = sand.u32 %s44, 1
        %s203 = scalar_lea.sflag [#allocation3], %s202
        %s204 = sand.u32 %s44, 1
        %s205 = smul.addr %s204, 32
        %s206 = scalar_lea.vmem [#allocation2], %s205
        %p207 = pneg %p57
        %p208 = pneg %p54
        %s209 = sand.u32 %s72, 1
        %s210 = scalar_lea.sflag [#allocation6], %s209
        %s211 = sand.u32 %s72, 1
        %s212 = smul.addr %s211, 8
        %s213 = scalar_lea.vmem [#allocation5], %s212
        %p214 = pneg %p85
        %p215 = pneg %p82
        %p216 = pneg %p113
        %p217 = pneg %p110
        %s218 = sand.u32 %s100, 1
        %s219 = scalar_lea.sflag [#allocation4], %s218
        %s220 = sand.u32 %s100, 1
        %s221 = smul.addr %s220, 8
        %s222 = scalar_lea.vmem [#allocation7], %s221
        %v223 = vld [vmem:[%s196] sm:$0xff]
        %v224 = vld [vmem:[%s186] sm:$0xff]
        %s225 = scalar_lea.vmem %s186, 8 [#allocation2]
        %v226 = vld [vmem:[%s225] sm:$0xff]
        %v227 = vmax.f32 %v224, %v226
        %s228 = scalar_lea.vmem %s186, 16 [#allocation2]
        %v229 = vld [vmem:[%s228] sm:$0xff]
        %v230 = vmax.f32 %v227, %v229
        %s231 = scalar_lea.vmem %s186, 24 [#allocation2]
        %v232 = vld [vmem:[%s231] sm:$0xff]
        %v233 = vmax.f32 %v230, %v232
        %v234 = vsub.f32 %v224, %v233
        %v235 = vmul.f32 %v234, 1.442695
        %v236 = vpow.pop %v235
        %vm237 = vcmp.eq.s32.totalorder %v223, 0
        %v238 = vsel %vm237, %v224, 0.0
        %v239 = vsub.f32 %v226, %v233
        %v240 = vmul.f32 %v239, 1.442695
        %v241 = vpow.pop %v240
        %v242 = vadd.f32 %v236, %v241
        %vm243 = vcmp.eq.s32.totalorder %v223, 1
        %v244 = vsel %vm243, %v226, 0.0
        %v245 = vadd.f32 %v238, %v244
        %v246 = vsub.f32 %v229, %v233
        %v247 = vmul.f32 %v246, 1.442695
        %v248 = vpow.pop %v247
        %v249 = vadd.f32 %v242, %v248
        %vm250 = vcmp.eq.s32.totalorder %v223, 2
        %v251 = vsel %vm250, %v229, 0.0
        %v252 = vadd.f32 %v245, %v251
        %v253 = vsub.f32 %v232, %v233
        %v254 = vmul.f32 %v253, 1.442695
        %v255 = vpow.pop %v254
        %v256 = vadd.f32 %v249, %v255
        %vm257 = vcmp.eq.s32.totalorder %v223, 3
        %v258 = vsel %vm257, %v232, 0.0
        %v259 = vadd.f32 %v252, %v258
        %v260 = vlog2.pop %v256
        %v261 = vmul.f32 %v260, 0.6931472
        %v262 = vadd.f32 %v233, %v261
        %vm263 = vcmp.ge.s32.totalorder %v223, 0
        %v264 = vsub.f32 %v262, %v259
        %v265 = vsel %vm263, %v264, 0.0
        %v266 = vadd.f32 %v265, 0.0
        %267 = vst [vmem:[%s222] sm:$0xff] %v266
        %s268 = sand.u32 %s100, 1
        %s269 = scalar_lea.sflag [#allocation4], %s268
        %s270 = sand.u32 %s100, 1
        %s271 = smul.addr %s270, 8
        %s272 = scalar_lea.vmem [#allocation7], %s271
        // Predicated region
        $region37: #{tpu_custom_call.1} parent=27 // pred_check
          %p273 = pneg %p110
        $region38: #{tpu_custom_call.1} parent=27 // pred_check_branch
          %275 = sbr.rel (%p273) target = $region40
        $region39: #{tpu_custom_call.1} parent=27 // pred_region
          %277 = vsyncadd %s269, 0
          %s278 = sadd.s32 %s27, %s26
          %s279 = smul.addr %s278, 8
          %s280 = scalar_lea.hbm %s2, %s279
          %s282 = sshll.u32 %s272, 4
          %s283 = int_to_ptr.vmem [resolvable:$true] %s282
          %s284 = sshll.u32 %s280, 4
          %s285 = int_to_ptr.hbm [resolvable:$true] %s284
          %287 = dma.vmem_to_hbm [thread:$0]  %s283, 128, %s285, %s269
        $region40: #{tpu_custom_call.1} parent=27 // pred_fallthru
          _
      $region28: #{tpu_custom_call.1} parent=5 // pred_fallthru
        _
      %p288 = scmp.le.s32.totalorder 2, %s17
      // Predicated region
      $region41: #{tpu_custom_call.1} parent=5 // pred_check
        %p289 = pneg %p288
      $region42: #{tpu_custom_call.1} parent=5 // pred_check_branch
        %291 = sbr.rel (%p289) target = $region44
      $region43: #{tpu_custom_call.1} parent=5 // pred_region
        %s292 = ssub.s32 %s17, 2
        // Predicated region
        $region45: #{tpu_custom_call.1} parent=43 // pred_check
          %p293 = pneg %p116
        $region46: #{tpu_custom_call.1} parent=43 // pred_check_branch
          %295 = sbr.rel (%p293) target = $region48
        $region47: #{tpu_custom_call.1} parent=43 // pred_region
          %s296 = sand.u32 %s101, 1
          %s297 = scalar_lea.sflag [#allocation4], %s296
          %s298 = sand.u32 %s101, 1
          %s299 = smul.addr %s298, 8
          %s300 = scalar_lea.vmem [#allocation7], %s299
          %302 = dma.done %s297, 128
        $region48: #{tpu_custom_call.1} parent=43 // pred_fallthru
          _
      $region44: #{tpu_custom_call.1} parent=5 // pred_fallthru
        _
    $region6: #{tpu_custom_call.1} parent=1 // loop_footer
      %s21 = sadd.s32 1, %s17
    $region7: #{tpu_custom_call.1} parent=1 // loop_footer_branch
      %16 = sbr.rel target = $region3
    $region8: #{tpu_custom_call.1} parent=1 // loop_exit
      _
    %303 = vsyncpa [#allocation3], 1
    %s304 = scalar_lea.sflag [#allocation3], 1
    %305 = vsyncpa %s304, 1
    %306 = vsyncpa [#allocation6], 1
    %s307 = scalar_lea.sflag [#allocation6], 1
    %308 = vsyncpa %s307, 1
    %309 = vsyncpa [#allocation4], 1
    %s310 = scalar_lea.sflag [#allocation4], 1
    %311 = vsyncpa %s310, 1

</llo_original>
